<compile_context>
chip_gen: v5e
topology: v5e:2x2
jax: 0.10.0
libtpu: 0.0.40
codegen_flags: <defaults>
</compile_context>

<pallas_src>
import functools

import jax
import jax.numpy as jnp
from jax.experimental import pallas as pl
from jax.experimental.pallas import tpu as pltpu


def _round_up(x, m):
    return ((x + m - 1) // m) * m


def _bahdanau_attention_kernel(q_ref, pk_ref, v_ref, len_ref, wq_ref, we_ref,
                               ctx_ref, alpha_ref, scores_scr, ctx_scr,
                               *, sc, n_chunks):
    """One grid step = one batch tile of tb rows.

    q_ref     : (tb, Q)      decoder queries (seq-1 dim squeezed in the wrapper)
    pk_ref    : (tb, Sp, H)  pre-projected encoder keys (Sp = padded seq)
    v_ref     : (tb, Sp, V)  encoder values
    len_ref   : (tb, 1) i32  valid source lengths
    wq_ref    : (Q, H)       query_layer weight (transposed), constant across grid
    we_ref    : (1, H)       energy_layer weight row, constant across grid
    ctx_ref   : (tb, V)      context output (lane-dense 2D)
    alpha_ref : (tb, Sp)     attention weights output
    scores_scr: (tb, Sp) f32 scratch for masked scores
    ctx_scr   : (tb, V)  f32 scratch accumulator for the context
    """
    # Query projection on the MXU: (tb, Q) @ (Q, H) -> (tb, H), f32 accumulation.
    qp = jnp.dot(q_ref[...].astype(jnp.float32), wq_ref[...].astype(jnp.float32),
                 preferred_element_type=jnp.float32)

    # Hoisted energy-layer weight broadcast (1, 1, H).
    we_b = we_ref[...].astype(jnp.float32).reshape(1, 1, -1)

    # ---- Phase 1: chunked additive energy / scores.  Chunking over the seq axis
    # avoids a full (tb, Sp, H) f32 energy temporary (the old VMEM/vreg hog).
    def _score_chunk(c):
        off = c * sc
        if not isinstance(off, int):
            off = pl.multiple_of(off, sc)
        pk_c = pk_ref[:, pl.ds(off, sc), :].astype(jnp.float32)        # (tb, sc, H)
        energy = jnp.tanh(qp[:, None, :] + pk_c)                       # (tb, sc, H)
        # energy_layer (H -> 1): multiply + lane-axis reduce (VPU/XLU).
        scores_scr[:, pl.ds(off, sc)] = jnp.sum(energy * we_b, axis=-1)

    if n_chunks == 1:
        _score_chunk(0)
    else:
        jax.lax.fori_loop(0, n_chunks, lambda c, x: (_score_chunk(c), x)[1], 0,
                          unroll=n_chunks <= 8)

    # ---- Length masking + numerically stable softmax along the lane-dense seq axis.
    scores = scores_scr[...]
    seq_idx = jax.lax.broadcasted_iota(jnp.int32, scores.shape, 1)     # (tb, Sp)
    scores = jnp.where(seq_idx < len_ref[...], scores, -jnp.inf)
    m = jnp.max(scores, axis=-1, keepdims=True)
    e = jnp.exp(scores - m)
    alphas = e / jnp.sum(e, axis=-1, keepdims=True)                    # (tb, Sp)
    alpha_ref[...] = alphas.astype(alpha_ref.dtype)

    # ---- Phase 2: context as a chunked VPU weighted sum -> lane-dense (tb, V).
    # (Replaces the old M=1 batched MXU matmuls and (tb,1,V) masked stores.)
    ctx_scr[...] = jnp.zeros_like(ctx_scr)

    def _ctx_chunk(c):
        off = c * sc
        if not isinstance(off, int):
            off = pl.multiple_of(off, sc)
        a_c = alpha_ref[:, pl.ds(off, sc)]                             # (tb, sc)
        v_c = v_ref[:, pl.ds(off, sc), :].astype(jnp.float32)          # (tb, sc, V)
        ctx_scr[...] += jnp.sum(a_c[:, :, None] * v_c, axis=1)         # (tb, V)

    if n_chunks == 1:
        _ctx_chunk(0)
    else:
        jax.lax.fori_loop(0, n_chunks, lambda c, x: (_ctx_chunk(c), x)[1], 0,
                          unroll=n_chunks <= 8)

    ctx_ref[...] = ctx_scr[...].astype(ctx_ref.dtype)


def _plan(b, s, h, v_dim, q_dim, in_itemsize):
    """Pick (batch tile, seq chunk, padded seq, #chunks, vmem limit) from shapes."""
    # Seq chunk: bounds the in-kernel (tb, sc, H) energy temporary.
    sc = min(512, _round_up(s, 8))
    sp = _round_up(s, sc)
    n_chunks = sp // sc

    try:
        vmem_cap = pltpu.get_tpu_info().vmem_capacity_bytes
    except Exception:               # conservative fallback = v7x per-core VMEM
        vmem_cap = 64 * 1024 * 1024
    vmem_budget = int(vmem_cap * 3 // 4)     # leave compiler headroom

    weight_bytes = 4 * (q_dim * h + h)
    # Per-batch-row bytes: double-buffered pipelined blocks + chunk temps + scratch.
    row_io = in_itemsize * (q_dim + sp * h + sp * v_dim) + 4 * (1 + v_dim + sp)
    row_tmp = 4 * (2 * sc * h + 2 * sc * v_dim + sp + v_dim)
    bytes_per_row = 2 * row_io + row_tmp

    b8 = max(8, _round_up(b, 8))
    tb = 8
    for cand in (16, 32, 64, 128, 256):
        if cand > b8:
            break
        if weight_bytes + cand * bytes_per_row <= vmem_budget:
            tb = cand
    # v7x megacore: keep >= 2 grid steps (when the batch allows it) so the
    # "parallel" batch axis shards tiles across both TensorCores.
    while tb > 8 and (b8 + tb - 1) // tb < 2:
        tb //= 2

    footprint = weight_bytes + tb * bytes_per_row
    vmem_limit = int(min(vmem_budget, max(2 * footprint, 16 * 1024 * 1024)))
    return tb, sc, sp, n_chunks, vmem_limit


@functools.partial(jax.jit, static_argnames=("stream_dtype",))
def bahdanau_attention(query, proj_key, value, src_lengths, wq, we, *,
                       stream_dtype=None):
    """Fused Bahdanau attention forward.

    query:       (B, 1, Q)        proj_key: (B, S, H)      value: (B, S, V)
    src_lengths: (B,) int         wq: (H, Q) torch-Linear layout   we: (1, H)
    stream_dtype: optional reduced dtype (e.g. jnp.bfloat16) for proj_key/value
        streaming (worth ~2x HBM traffic on v5e/v6e/v7x); compute stays f32.
    Returns (context (B, 1, V), alphas (B, 1, S)).
    """
    b, one, q_dim = query.shape
    _, s, h = proj_key.shape
    _, _, v_dim = value.shape
    assert one == 1 and wq.shape == (h, q_dim) and we.shape == (1, h)

    if stream_dtype is not None:
        proj_key = proj_key.astype(stream_dtype)
        value = value.astype(stream_dtype)
    in_itemsize = jnp.dtype(proj_key.dtype).itemsize

    tb, sc, sp, n_chunks, vmem_limit = _plan(b, s, h, v_dim, q_dim, in_itemsize)

    # Pad batch to a multiple of the tile and seq to a multiple of the chunk.
    # Padded batch rows get length = sp (fully valid -> finite softmax, sliced
    # away below); padded seq positions of real rows are masked by the length
    # test (length <= s <= sp) so they get alpha = 0 and zero value rows.
    bp = _round_up(b, tb)
    pad_b, pad_s = bp - b, sp - s
    q2 = jnp.pad(query.reshape(b, q_dim), ((0, pad_b), (0, 0)))
    pk = jnp.pad(proj_key, ((0, pad_b), (0, pad_s), (0, 0)))
    val = jnp.pad(value, ((0, pad_b), (0, pad_s), (0, 0)))
    lens = jnp.pad(src_lengths.astype(jnp.int32).reshape(b, 1),
                   ((0, pad_b), (0, 0)), constant_values=sp)
    wq_t = wq.T.astype(jnp.float32)            # (Q, H): lane-dense along H
    we_row = we.reshape(1, h).astype(jnp.float32)

    cost = pl.CostEstimate(
        flops=(2 * bp * q_dim * h          # query projection
               + 3 * bp * sp * h           # energy add + We contraction
               + 2 * bp * sp * v_dim       # context weighted sum
               + 5 * bp * sp),             # softmax
        transcendentals=bp * sp * (h + 1),  # tanh + exp
        bytes_accessed=(in_itemsize * bp * sp * (h + v_dim)
                        + 4 * (bp * q_dim + bp + q_dim * h + h
                               + bp * v_dim + bp * sp)),
    )

    kernel = functools.partial(_bahdanau_attention_kernel, sc=sc, n_chunks=n_chunks)

    context, alphas = pl.pallas_call(
        kernel,
        out_shape=(
            jax.ShapeDtypeStruct((bp, v_dim), value.dtype),
            jax.ShapeDtypeStruct((bp, sp), jnp.float32),
        ),
        grid_spec=pltpu.PrefetchScalarGridSpec(
            num_scalar_prefetch=0,
            grid=(bp // tb,),
            in_specs=[
                pl.BlockSpec((tb, q_dim), lambda i: (i, 0)),          # queries
                pl.BlockSpec((tb, sp, h), lambda i: (i, 0, 0)),       # proj_key tile
                pl.BlockSpec((tb, sp, v_dim), lambda i: (i, 0, 0)),   # value tile
                pl.BlockSpec((tb, 1), lambda i: (i, 0)),              # lengths
                pl.BlockSpec((q_dim, h), lambda i: (0, 0)),           # Wq^T (constant -> fetched once)
                pl.BlockSpec((1, h), lambda i: (0, 0)),               # We row (constant)
            ],
            out_specs=(
                pl.BlockSpec((tb, v_dim), lambda i: (i, 0)),          # context, lane-dense 2D
                pl.BlockSpec((tb, sp), lambda i: (i, 0)),             # alphas
            ),
            scratch_shapes=[
                pltpu.VMEM((tb, sp), jnp.float32),                    # scores
                pltpu.VMEM((tb, v_dim), jnp.float32),                 # context accumulator
            ],
        ),
        compiler_params=pltpu.CompilerParams(
            dimension_semantics=("parallel",),   # batch tiles shard across TCs (megacore)
            vmem_limit_bytes=vmem_limit,
        ),
        cost_estimate=cost,
    )(q2, pk, val, lens, wq_t, we_row)

    context = context[:b].reshape(b, 1, v_dim)
    alphas = alphas[:b, :s].reshape(b, 1, s)
    return context, alphas


if __name__ == "__main__":
    hidden = 32
    batch, seq = 2, 8
    query_size = hidden          # default query_size
    value_size = 2 * hidden      # encoder outputs (bidirectional) as values

    key = jax.random.PRNGKey(0)
    kq, kk, kv, kwq, kwe = jax.random.split(key, 5)

    query = jax.random.normal(kq, (batch, 1, query_size), dtype=jnp.float32)
    proj_key = jax.random.normal(kk, (batch, seq, hidden), dtype=jnp.float32)
    value = jax.random.normal(kv, (batch, seq, value_size), dtype=jnp.float32)
    src_lengths = jnp.array([seq, seq - 3], dtype=jnp.int32)

    # nn.Linear weights, (out_features, in_features), bias=False.
    wq = jax.random.normal(kwq, (hidden, query_size), dtype=jnp.float32) / jnp.sqrt(query_size)
    we = jax.random.normal(kwe, (1, hidden), dtype=jnp.float32) / jnp.sqrt(hidden)
    # NOTE: key_layer exists in the module but is unused in forward (proj_key is precomputed).

    context, alphas = bahdanau_attention(query, proj_key, value, src_lengths, wq, we)
    context = jax.block_until_ready(context)
    alphas = jax.block_until_ready(alphas)

    # Pure-JAX reference mirroring the PyTorch forward.
    qp = jnp.einsum("bqk,hk->bqh", query, wq)
    energy = jnp.tanh(qp + proj_key)
    scores = jnp.swapaxes(jnp.einsum("bsh,oh->bso", energy, we), 1, 2)   # (B,1,S)
    pos = jnp.arange(seq)[None, None, :]
    scores = jnp.where(pos >= src_lengths[:, None, None], -jnp.inf, scores)
    alphas_ref = jax.nn.softmax(scores, axis=-1)
    context_ref = jnp.einsum("bqs,bsv->bqv", alphas_ref, value)

    assert context.shape == (batch, 1, value_size)
    assert alphas.shape == (batch, 1, seq)
    assert jnp.allclose(alphas, alphas_ref, atol=1e-4, rtol=1e-4)
    assert jnp.allclose(context, context_ref, atol=1e-4, rtol=1e-4)

    print("KERNEL_OK")
</pallas_src>

<mosaic_0001>
module attributes {stable_mosaic.version = 11 : i64} {
  func.func @_bahdanau_attention_kernel(%arg0: i32, %arg1: memref<8x32xf32, #tpu.memory_space<vmem>>, %arg2: memref<8x8x32xf32, #tpu.memory_space<vmem>>, %arg3: memref<8x8x64xf32, #tpu.memory_space<vmem>>, %arg4: memref<8x1xi32, #tpu.memory_space<vmem>>, %arg5: memref<32x32xf32, #tpu.memory_space<vmem>>, %arg6: memref<1x32xf32, #tpu.memory_space<vmem>>, %arg7: memref<8x64xf32, #tpu.memory_space<vmem>>, %arg8: memref<8x8xf32, #tpu.memory_space<vmem>>, %arg9: memref<8x8xf32, #tpu.memory_space<vmem>>, %arg10: memref<8x64xf32, #tpu.memory_space<vmem>>) attributes {dimension_semantics = [#tpu.dimension_semantics<parallel>], iteration_bounds = array<i64: 1>, scalar_prefetch = 0 : i64, scratch_operands = 2 : i64, tpu.core_type = #tpu.core_type<tc>, window_params = [{transform_indices = @transform_0, window_bounds = array<i64: 8, 32>}, {transform_indices = @transform_1, window_bounds = array<i64: 8, 8, 32>}, {transform_indices = @transform_2, window_bounds = array<i64: 8, 8, 64>}, {transform_indices = @transform_3, window_bounds = array<i64: 8, 1>}, {pipeline_mode = #tpu.pipeline_mode<synchronous>, transform_indices = @transform_4, window_bounds = array<i64: 32, 32>}, {pipeline_mode = #tpu.pipeline_mode<synchronous>, transform_indices = @transform_5, window_bounds = array<i64: 1, 32>}, {transform_indices = @transform_6, window_bounds = array<i64: 8, 64>}, {transform_indices = @transform_7, window_bounds = array<i64: 8, 8>}]} {
    %c0 = arith.constant 0 : index
    %c0_0 = arith.constant 0 : index
    %0 = vector.load %arg1[%c0, %c0_0] : memref<8x32xf32, #tpu.memory_space<vmem>>, vector<8x32xf32>
    %c0_1 = arith.constant 0 : index
    %c0_2 = arith.constant 0 : index
    %1 = vector.load %arg5[%c0_1, %c0_2] : memref<32x32xf32, #tpu.memory_space<vmem>>, vector<32x32xf32>
    %cst = arith.constant dense<0.000000e+00> : vector<8x32xf32>
    %2 = tpu.matmul %0, %1, %cst {dimension_numbers = #tpu.dot_dimension_numbers<[1], [0], [0], [1], [0, 0, 1, 1], [], []>} : vector<8x32xf32>, vector<32x32xf32>, vector<8x32xf32> -> vector<8x32xf32>
    %c0_3 = arith.constant 0 : index
    %c0_4 = arith.constant 0 : index
    %3 = vector.load %arg6[%c0_3, %c0_4] : memref<1x32xf32, #tpu.memory_space<vmem>>, vector<1x32xf32>
    %4 = vector.shape_cast %3 : vector<1x32xf32> to vector<1x1x32xf32>
    %c0_5 = arith.constant 0 : index
    %c0_6 = arith.constant 0 : index
    %c0_7 = arith.constant 0 : index
    %5 = vector.load %arg2[%c0_5, %c0_6, %c0_7] : memref<8x8x32xf32, #tpu.memory_space<vmem>>, vector<8x8x32xf32>
    %6 = vector.shape_cast %2 : vector<8x32xf32> to vector<8x1x32xf32>
    %7 = vector.broadcast %6 : vector<8x1x32xf32> to vector<8x8x32xf32>
    %8 = arith.addf %7, %5 : vector<8x8x32xf32>
    %9 = math.tanh %8 : vector<8x8x32xf32>
    %10 = vector.broadcast %4 : vector<1x1x32xf32> to vector<8x8x32xf32>
    %11 = arith.mulf %9, %10 : vector<8x8x32xf32>
    %cst_8 = arith.constant dense<0.000000e+00> : vector<8x8xf32>
    %12 = vector.multi_reduction <add>, %11, %cst_8 [2] : vector<8x8x32xf32> to vector<8x8xf32>
    %c0_9 = arith.constant 0 : index
    %c0_10 = arith.constant 0 : index
    %13 = vector.load %arg9[%c0_9, %c0_10] : memref<8x8xf32, #tpu.memory_space<vmem>>, vector<8x8xf32>
    tpu.vector_store %arg9[%c0_9, %c0_10], %12 {strides = array<i32>} : memref<8x8xf32, #tpu.memory_space<vmem>>, vector<8x8xf32>,
    %c0_11 = arith.constant 0 : index
    %c0_12 = arith.constant 0 : index
    %14 = vector.load %arg9[%c0_11, %c0_12] : memref<8x8xf32, #tpu.memory_space<vmem>>, vector<8x8xf32>
    %15 = tpu.iota {dimensions = array<i32: 1>} : vector<8x8xi32>
    %c0_13 = arith.constant 0 : index
    %c0_14 = arith.constant 0 : index
    %16 = vector.load %arg4[%c0_13, %c0_14] : memref<8x1xi32, #tpu.memory_space<vmem>>, vector<8x1xi32>
    %17 = vector.broadcast %16 : vector<8x1xi32> to vector<8x8xi32>
    %18 = arith.cmpi slt, %15, %17 : vector<8x8xi32>
    %cst_15 = arith.constant 0xFF800000 : f32
    %19 = vector.broadcast %cst_15 : f32 to vector<8x8xf32>
    %20 = arith.select %18, %14, %19 : vector<8x8xi1>, vector<8x8xf32>
    %cst_16 = arith.constant dense<0xFF800000> : vector<8xf32>
    %21 = vector.multi_reduction <maximumf>, %20, %cst_16 [1] : vector<8x8xf32> to vector<8xf32>
    %22 = vector.shape_cast %21 : vector<8xf32> to vector<8x1xf32>
    %23 = vector.broadcast %22 : vector<8x1xf32> to vector<8x8xf32>
    %24 = arith.subf %20, %23 : vector<8x8xf32>
    %25 = math.exp %24 : vector<8x8xf32>
    %cst_17 = arith.constant dense<0.000000e+00> : vector<8xf32>
    %26 = vector.multi_reduction <add>, %25, %cst_17 [1] : vector<8x8xf32> to vector<8xf32>
    %27 = vector.shape_cast %26 : vector<8xf32> to vector<8x1xf32>
    %28 = vector.broadcast %27 : vector<8x1xf32> to vector<8x8xf32>
    %29 = arith.divf %25, %28 : vector<8x8xf32>
    %c0_18 = arith.constant 0 : index
    %c0_19 = arith.constant 0 : index
    %30 = vector.load %arg8[%c0_18, %c0_19] : memref<8x8xf32, #tpu.memory_space<vmem>>, vector<8x8xf32>
    tpu.vector_store %arg8[%c0_18, %c0_19], %29 {strides = array<i32>} : memref<8x8xf32, #tpu.memory_space<vmem>>, vector<8x8xf32>,
    %cst_20 = arith.constant 0.000000e+00 : f32
    %31 = vector.broadcast %cst_20 : f32 to vector<8x64xf32>
    %c0_21 = arith.constant 0 : index
    %c0_22 = arith.constant 0 : index
    %32 = vector.load %arg10[%c0_21, %c0_22] : memref<8x64xf32, #tpu.memory_space<vmem>>, vector<8x64xf32>
    tpu.vector_store %arg10[%c0_21, %c0_22], %31 {strides = array<i32>} : memref<8x64xf32, #tpu.memory_space<vmem>>, vector<8x64xf32>,
    %c0_23 = arith.constant 0 : index
    %c0_24 = arith.constant 0 : index
    %33 = vector.load %arg8[%c0_23, %c0_24] : memref<8x8xf32, #tpu.memory_space<vmem>>, vector<8x8xf32>
    %c0_25 = arith.constant 0 : index
    %c0_26 = arith.constant 0 : index
    %c0_27 = arith.constant 0 : index
    %34 = vector.load %arg3[%c0_25, %c0_26, %c0_27] : memref<8x8x64xf32, #tpu.memory_space<vmem>>, vector<8x8x64xf32>
    %c0_28 = arith.constant 0 : index
    %c0_29 = arith.constant 0 : index
    %35 = vector.load %arg10[%c0_28, %c0_29] : memref<8x64xf32, #tpu.memory_space<vmem>>, vector<8x64xf32>
    %36 = vector.shape_cast %33 : vector<8x8xf32> to vector<8x8x1xf32>
    %37 = vector.broadcast %36 : vector<8x8x1xf32> to vector<8x8x64xf32>
    %38 = arith.mulf %37, %34 : vector<8x8x64xf32>
    %cst_30 = arith.constant dense<0.000000e+00> : vector<8x64xf32>
    %39 = vector.multi_reduction <add>, %38, %cst_30 [1] : vector<8x8x64xf32> to vector<8x64xf32>
    %40 = arith.addf %35, %39 : vector<8x64xf32>
    %c0_31 = arith.constant 0 : index
    %c0_32 = arith.constant 0 : index
    %41 = vector.load %arg10[%c0_31, %c0_32] : memref<8x64xf32, #tpu.memory_space<vmem>>, vector<8x64xf32>
    tpu.vector_store %arg10[%c0_31, %c0_32], %40 {strides = array<i32>} : memref<8x64xf32, #tpu.memory_space<vmem>>, vector<8x64xf32>,
    %c0_33 = arith.constant 0 : index
    %c0_34 = arith.constant 0 : index
    %42 = vector.load %arg10[%c0_33, %c0_34] : memref<8x64xf32, #tpu.memory_space<vmem>>, vector<8x64xf32>
    %c0_35 = arith.constant 0 : index
    %c0_36 = arith.constant 0 : index
    %43 = vector.load %arg7[%c0_35, %c0_36] : memref<8x64xf32, #tpu.memory_space<vmem>>, vector<8x64xf32>
    tpu.vector_store %arg7[%c0_35, %c0_36], %42 {strides = array<i32>} : memref<8x64xf32, #tpu.memory_space<vmem>>, vector<8x64xf32>,
    return
  }
  func.func @transform_0(%arg0: i32) -> (i32, i32) {
    %c0_i32 = arith.constant 0 : i32
    %c0_i32_0 = arith.constant 0 : i32
    return %arg0, %c0_i32 : i32, i32
  }
  func.func @transform_1(%arg0: i32) -> (i32, i32, i32) {
    %c0_i32 = arith.constant 0 : i32
    %c0_i32_0 = arith.constant 0 : i32
    %c0_i32_1 = arith.constant 0 : i32
    return %arg0, %c0_i32, %c0_i32_0 : i32, i32, i32
  }
  func.func @transform_2(%arg0: i32) -> (i32, i32, i32) {
    %c0_i32 = arith.constant 0 : i32
    %c0_i32_0 = arith.constant 0 : i32
    %c0_i32_1 = arith.constant 0 : i32
    return %arg0, %c0_i32, %c0_i32_0 : i32, i32, i32
  }
  func.func @transform_3(%arg0: i32) -> (i32, i32) {
    %c0_i32 = arith.constant 0 : i32
    %c0_i32_0 = arith.constant 0 : i32
    return %arg0, %c0_i32 : i32, i32
  }
  func.func @transform_4(%arg0: i32) -> (i32, i32) {
    %c0_i32 = arith.constant 0 : i32
    %c0_i32_0 = arith.constant 0 : i32
    %c0_i32_1 = arith.constant 0 : i32
    return %c0_i32, %c0_i32_0 : i32, i32
  }
  func.func @transform_5(%arg0: i32) -> (i32, i32) {
    %c0_i32 = arith.constant 0 : i32
    %c0_i32_0 = arith.constant 0 : i32
    %c0_i32_1 = arith.constant 0 : i32
    return %c0_i32, %c0_i32_0 : i32, i32
  }
  func.func @transform_6(%arg0: i32) -> (i32, i32) {
    %c0_i32 = arith.constant 0 : i32
    %c0_i32_0 = arith.constant 0 : i32
    return %arg0, %c0_i32 : i32, i32
  }
  func.func @transform_7(%arg0: i32) -> (i32, i32) {
    %c0_i32 = arith.constant 0 : i32
    %c0_i32_0 = arith.constant 0 : i32
    return %arg0, %c0_i32 : i32, i32
  }
}

</mosaic_0001>

<llo_original>
// kernel: bahdanau_attention.1
$region0: #{bahdanau_attention.1}
  #allocation0 [shape = 'u32[]', space=smem, size = 0x4, offset = 0x4, fixed_abs, tag = 'smem constant byte address 0x4 - core index']
  #allocation1 [shape = 'u32[72,128]{1,0:T(1,128)}', space=vmem, size = 0x9000, scoped, tag = 'internal scratch']
  #allocation2 [shape = 'f32[8,8]{1,0:T(8,128)}', space=vmem, size = 0x1000, scoped, tag = 'scratch operand']
  #allocation3 [shape = 'f32[8,64]{1,0:T(8,128)}', space=vmem, size = 0x1000, scoped, tag = 'scratch operand']
  %s0 = inlined_call_operand.vmem [shape: f32[8,32], index: 0, kind: input, shape index: {}]
  %s1 = inlined_call_operand.vmem [shape: f32[8,8,32], index: 1, kind: input, shape index: {}]
  %s2 = inlined_call_operand.vmem [shape: f32[8,8,64], index: 2, kind: input, shape index: {}]
  %s3 = inlined_call_operand.vmem [shape: s32[8,1], index: 3, kind: input, shape index: {}]
  %s4 = inlined_call_operand.vmem [shape: f32[32,32], index: 4, kind: input, shape index: {}]
  %s5 = inlined_call_operand.vmem [shape: f32[1,32], index: 5, kind: input, shape index: {}]
  %s6 = inlined_call_operand.vmem [shape: f32[8,64], index: 6, kind: output, shape index: {0}]
  %s7 = inlined_call_operand.vmem [shape: f32[8,8], index: 7, kind: output, shape index: {1}]
  %8 = xla_tuple %s6, %s7
  %s9 = sld [smem:[#allocation0]]
  $region42: #{bahdanau_attention.1} parent=0
    _
  %s11 = ssub.s32 1, %s9
  %s12 = scalar_select 0, %s11, %s9
  // Predicated region
  $region2: #{bahdanau_attention.1} parent=0 // pred_check
    _
  $region3: #{bahdanau_attention.1} parent=0 // pred_check_branch
    %14 = sbr.rel (0) target = $region5
  $region4: #{bahdanau_attention.1} parent=0 // pred_region
    _
  $region5: #{bahdanau_attention.1} parent=0 // pred_fallthru
    _
  // Predicated region
  $region6: #{bahdanau_attention.1} parent=0 // pred_check
    _
  $region7: #{bahdanau_attention.1} parent=0 // pred_check_branch
    %16 = sbr.rel (0) target = $region9
  $region8: #{bahdanau_attention.1} parent=0 // pred_region
    _
  $region9: #{bahdanau_attention.1} parent=0 // pred_fallthru
    _
  // Predicated region
  $region10: #{bahdanau_attention.1} parent=0 // pred_check
    _
  $region11: #{bahdanau_attention.1} parent=0 // pred_check_branch
    %18 = sbr.rel (0) target = $region13
  $region12: #{bahdanau_attention.1} parent=0 // pred_region
    _
  $region13: #{bahdanau_attention.1} parent=0 // pred_fallthru
    _
  // Predicated region
  $region14: #{bahdanau_attention.1} parent=0 // pred_check
    _
  $region15: #{bahdanau_attention.1} parent=0 // pred_check_branch
    %20 = sbr.rel (0) target = $region17
  $region16: #{bahdanau_attention.1} parent=0 // pred_region
    _
  $region17: #{bahdanau_attention.1} parent=0 // pred_fallthru
    _
  // Predicated region
  $region18: #{bahdanau_attention.1} parent=0 // pred_check
    _
  $region19: #{bahdanau_attention.1} parent=0 // pred_check_branch
    %22 = sbr.rel (0) target = $region21
  $region20: #{bahdanau_attention.1} parent=0 // pred_region
    _
  $region21: #{bahdanau_attention.1} parent=0 // pred_fallthru
    _
  // Predicated region
  $region22: #{bahdanau_attention.1} parent=0 // pred_check
    _
  $region23: #{bahdanau_attention.1} parent=0 // pred_check_branch
    %24 = sbr.rel (0) target = $region25
  $region24: #{bahdanau_attention.1} parent=0 // pred_region
    _
  $region25: #{bahdanau_attention.1} parent=0 // pred_fallthru
    _
  %v25 = vld [vmem:[%s0] sm:$0xff]
  %v26 = vld [vmem:[%s4] sm:$0xff]
  %v27 = vld [vmem:[%s4 + $0x8] sm:$0xff]
  %v28 = vld [vmem:[%s4 + $0x10] sm:$0xff]
  %v29 = vld [vmem:[%s4 + $0x18] sm:$0xff]
  %vm30 = vcmask 261120
  %v32 = vsel %vm30, %v25, 0
  %34 = vmatpush.msra.mxu0 0.0
  %35 = vmatpush.msra.mxu0 0.0
  %36 = vmatpush.msra.mxu0 0.0
  %37 = vmatpush.msra.mxu0 0.0
  %38 = vmatpush.msra.mxu0 0.0
  %39 = vmatpush.msra.mxu0 0.0
  %40 = vmatpush.msra.mxu0 0.0
  %41 = vmatpush.msra.mxu0 0.0
  %42 = vmatpush.msra.mxu0 0.0
  %43 = vmatpush.msra.mxu0 0.0
  %44 = vmatpush.msra.mxu0 0.0
  %45 = vmatpush.msra.mxu0 0.0
  %46 = vmatpush.msra.mxu0 %v29
  %47 = vmatpush.msra.mxu0 %v28
  %48 = vmatpush.msra.mxu0 %v27
  %49 = vmatpush.msra.mxu0 %v26
  %50 = vmatmul.f32.gmra.mxu0 %v32
  %v51 = vpop.f32.mrf.mxu0
  %v52 = vadd.f32 0.0, %v51
  %53 = vdwg.mxu0
  %v54 = vld [vmem:[%s5] sm:$0x1]
  %v55 = vld [vmem:[%s1] sm:$0xff]
  %v56 = vld [vmem:[%s1 + $0x8] sm:$0xff]
  %v57 = vld [vmem:[%s1 + $0x10] sm:$0xff]
  %v58 = vld [vmem:[%s1 + $0x18] sm:$0xff]
  %v59 = vld [vmem:[%s1 + $0x20] sm:$0xff]
  %v60 = vld [vmem:[%s1 + $0x28] sm:$0xff]
  %v61 = vld [vmem:[%s1 + $0x30] sm:$0xff]
  %v62 = vld [vmem:[%s1 + $0x38] sm:$0xff]
  %v64 = vrot.slane %v52, 1
  %v65 = vrot.slane %v52, 2
  %v66 = vrot.slane %v52, 3
  %v67 = vrot.slane %v52, 4
  %v68 = vrot.slane %v52, 5
  %v69 = vrot.slane %v52, 6
  %v70 = vrot.slane %v52, 7
  %v71 = vperm.slane %v52, 0
  %v72 = vperm.slane %v64, 0
  %v73 = vperm.slane %v65, 0
  %v74 = vperm.slane %v66, 0
  %v75 = vperm.slane %v67, 0
  %v76 = vperm.slane %v68, 0
  %v77 = vperm.slane %v69, 0
  %v78 = vperm.slane %v70, 0
  %v87 = vadd.f32 %v71, %v55
  %v88 = vadd.f32 %v72, %v56
  %v89 = vadd.f32 %v73, %v57
  %v90 = vadd.f32 %v74, %v58
  %v91 = vadd.f32 %v75, %v59
  %v92 = vadd.f32 %v76, %v60
  %v93 = vadd.f32 %v77, %v61
  %v94 = vadd.f32 %v78, %v62
  %v95 = vtanh.pop %v87
  %v96 = vtanh.pop %v88
  %v97 = vtanh.pop %v89
  %v98 = vtanh.pop %v90
  %v99 = vtanh.pop %v91
  %v100 = vtanh.pop %v92
  %v101 = vtanh.pop %v93
  %v102 = vtanh.pop %v94
  %v104 = vperm.slane %v54, 0
  %v106 = vmul.f32 %v95, %v104
  %v107 = vmul.f32 %v96, %v104
  %v108 = vmul.f32 %v97, %v104
  %v109 = vmul.f32 %v98, %v104
  %v110 = vmul.f32 %v99, %v104
  %v111 = vmul.f32 %v100, %v104
  %v112 = vmul.f32 %v101, %v104
  %v113 = vmul.f32 %v102, %v104
  %v114 = vsel %vm30, %v106, 0.0
  %115 = vadd.xlane.f32.xlu0 %v114
  %v116 = vpop.xlane.xlu0 %115
  %v117 = vsel %vm30, %v107, 0.0
  %118 = vadd.xlane.f32.xlu0 %v117
  %v119 = vpop.xlane.xlu0 %118
  %v120 = vsel %vm30, %v108, 0.0
  %121 = vadd.xlane.f32.xlu0 %v120
  %v122 = vpop.xlane.xlu0 %121
  %v123 = vsel %vm30, %v109, 0.0
  %124 = vadd.xlane.f32.xlu0 %v123
  %v125 = vpop.xlane.xlu0 %124
  %v126 = vsel %vm30, %v110, 0.0
  %127 = vadd.xlane.f32.xlu0 %v126
  %v128 = vpop.xlane.xlu0 %127
  %v129 = vsel %vm30, %v111, 0.0
  %130 = vadd.xlane.f32.xlu0 %v129
  %v131 = vpop.xlane.xlu0 %130
  %v132 = vsel %vm30, %v112, 0.0
  %133 = vadd.xlane.f32.xlu0 %v132
  %v134 = vpop.xlane.xlu0 %133
  %v135 = vsel %vm30, %v113, 0.0
  %136 = vadd.xlane.f32.xlu0 %v135
  %v137 = vpop.xlane.xlu0 %136
  %v146 = vlaneseq
  %v147 = vand.u32 %v146, 127
  %v148 = vperm.slane %v116, %v147
  %v149 = vperm.slane %v119, %v147
  %v150 = vperm.slane %v122, %v147
  %v151 = vperm.slane %v125, %v147
  %v152 = vperm.slane %v128, %v147
  %v153 = vperm.slane %v131, %v147
  %v154 = vperm.slane %v134, %v147
  %v155 = vperm.slane %v137, %v147
  %vm156 = vcmask 1041409
  %v157 = vsel %vm156, %v149, %v148
  %vm158 = vcmask 1042434
  %v159 = vsel %vm158, %v150, %v157
  %vm160 = vcmask 1043459
  %v161 = vsel %vm160, %v151, %v159
  %vm162 = vcmask 1044484
  %v163 = vsel %vm162, %v152, %v161
  %vm164 = vcmask 1045509
  %v165 = vsel %vm164, %v153, %v163
  %vm166 = vcmask 1046534
  %v167 = vsel %vm166, %v154, %v165
  %vm168 = vcmask 1047559
  %v169 = vsel %vm168, %v155, %v167
  %vm171 = vcmask 64512
  %172 = vst.msk [vmem:[#allocation2] sm:$0xff] %vm171, %v169
  %v173 = vld [vmem:[#allocation2] sm:$0xff]
  %v174 = vld [vmem:[%s3] sm:$0xff]
  %175 = vset.pattern.permute.xlu0 0
  %176 = vperm.xlu0 %175, %v174
  %v177 = vpop.permute.xlu0 %176
  %vm178 = vcmp.lt.s32.totalorder %v147, %v177
  %v179 = vsel %vm178, %v173, -inf
  %v180 = vsel %vm171, %v179, -inf
  %181 = vmax.xlane.f32.xlu0 %v180
  %v182 = vpop.xlane.xlu0 %181
  %v183 = vsub.f32 %v179, %v182
  %v184 = vmul.f32 %v183, 1.442695
  %v185 = vpow.pop %v184
  %v186 = vsel %vm171, %v185, 0.0
  %187 = vadd.xlane.f32.xlu0 %v186
  %v188 = vpop.xlane.xlu0 %187
  %v189 = vrcp.pop %v188
  %v190 = vmul.f32 %v188, %v189
  %v191 = vsub.f32 1.0, %v190
  %v192 = vmul.f32 %v189, %v191
  %v193 = vadd.f32 %v189, %v192
  %vm194 = vweird.f32 %v188
  %vm195 = vweird.f32 %v189
  %vm196 = vmor %vm194, %vm195
  %v197 = vsel %vm196, %v189, %v193
  %v198 = vand.u32 2147483647, %v188
  %vm199 = vcmp.eq.f32.partialorder %v198, 8.507059e+37
  %v200 = vand.u32 %v188, 2147483648
  %v201 = vor.u32 1.1754944e-38, %v200
  %v202 = vsel %vm199, %v201, %v197
  %v203 = vmul.f32 %v185, %v202
  %204 = vst.msk [vmem:[%s7] sm:$0xff] %vm171, %v203
  %vm205 = vcmask 523264
  %206 = vst.msk [vmem:[#allocation3] sm:$0xff] %vm205, 0.0
  %v207 = vld [vmem:[%s7] sm:$0xff]
  %v208 = vld [vmem:[%s2] sm:$0xff]
  %v209 = vld [vmem:[%s2 + $0x8] sm:$0xff]
  %v210 = vld [vmem:[%s2 + $0x10] sm:$0xff]
  %v211 = vld [vmem:[%s2 + $0x18] sm:$0xff]
  %v212 = vld [vmem:[%s2 + $0x20] sm:$0xff]
  %v213 = vld [vmem:[%s2 + $0x28] sm:$0xff]
  %v214 = vld [vmem:[%s2 + $0x30] sm:$0xff]
  %v215 = vld [vmem:[%s2 + $0x38] sm:$0xff]
  %v216 = vld [vmem:[#allocation3] sm:$0xff]
  %v217 = vperm.slane %v207, 0
  %v218 = vlaneseq
  %v219 = vshrl.u32 %v218, 7
  %221 = vset.pattern.permute.xlu0 %v219
  %222 = vperm.xlu0 %221, %v217
  %v223 = vpop.permute.xlu0 %222
  %v224 = vperm.slane %v207, 1
  %v225 = vlaneseq
  %v226 = vshrl.u32 %v225, 7
  %228 = vset.pattern.permute.xlu0 %v226
  %229 = vperm.xlu0 %228, %v224
  %v230 = vpop.permute.xlu0 %229
  %v231 = vperm.slane %v207, 2
  %v232 = vlaneseq
  %v233 = vshrl.u32 %v232, 7
  %235 = vset.pattern.permute.xlu0 %v233
  %236 = vperm.xlu0 %235, %v231
  %v237 = vpop.permute.xlu0 %236
  %v238 = vperm.slane %v207, 3
  %v239 = vlaneseq
  %v240 = vshrl.u32 %v239, 7
  %242 = vset.pattern.permute.xlu0 %v240
  %243 = vperm.xlu0 %242, %v238
  %v244 = vpop.permute.xlu0 %243
  %v245 = vperm.slane %v207, 4
  %v246 = vlaneseq
  %v247 = vshrl.u32 %v246, 7
  %249 = vset.pattern.permute.xlu0 %v247
  %250 = vperm.xlu0 %249, %v245
  %v251 = vpop.permute.xlu0 %250
  %v252 = vperm.slane %v207, 5
  %v253 = vlaneseq
  %v254 = vshrl.u32 %v253, 7
  %256 = vset.pattern.permute.xlu0 %v254
  %257 = vperm.xlu0 %256, %v252
  %v258 = vpop.permute.xlu0 %257
  %v259 = vperm.slane %v207, 6
  %v260 = vlaneseq
  %v261 = vshrl.u32 %v260, 7
  %263 = vset.pattern.permute.xlu0 %v261
  %264 = vperm.xlu0 %263, %v259
  %v265 = vpop.permute.xlu0 %264
  %v266 = vperm.slane %v207, 7
  %v267 = vlaneseq
  %v268 = vshrl.u32 %v267, 7
  %270 = vset.pattern.permute.xlu0 %v268
  %271 = vperm.xlu0 %270, %v266
  %v272 = vpop.permute.xlu0 %271
  %v273 = vmul.f32 %v223, %v208
  %v274 = vmul.f32 %v230, %v209
  %v275 = vmul.f32 %v237, %v210
  %v276 = vmul.f32 %v244, %v211
  %v277 = vmul.f32 %v251, %v212
  %v278 = vmul.f32 %v258, %v213
  %v279 = vmul.f32 %v265, %v214
  %v280 = vmul.f32 %v272, %v215
  %v281 = vsel %vm205, %v273, 0.0
  %v282 = vrot.slane %v281, 4
  %v283 = vadd.f32 %v281, %v282
  %v284 = vrot.slane %v283, 2
  %v285 = vadd.f32 %v283, %v284
  %v286 = vrot.slane %v285, 1
  %v287 = vadd.f32 %v285, %v286
  %v288 = vsel %vm205, %v274, 0.0
  %v289 = vrot.slane %v288, 4
  %v290 = vadd.f32 %v288, %v289
  %v291 = vrot.slane %v290, 2
  %v292 = vadd.f32 %v290, %v291
  %v293 = vrot.slane %v292, 1
  %v294 = vadd.f32 %v292, %v293
  %v295 = vsel %vm205, %v275, 0.0
  %v296 = vrot.slane %v295, 4
  %v297 = vadd.f32 %v295, %v296
  %v298 = vrot.slane %v297, 2
  %v299 = vadd.f32 %v297, %v298
  %v300 = vrot.slane %v299, 1
  %v301 = vadd.f32 %v299, %v300
  %v302 = vsel %vm205, %v276, 0.0
  %v303 = vrot.slane %v302, 4
  %v304 = vadd.f32 %v302, %v303
  %v305 = vrot.slane %v304, 2
  %v306 = vadd.f32 %v304, %v305
  %v307 = vrot.slane %v306, 1
  %v308 = vadd.f32 %v306, %v307
  %v309 = vsel %vm205, %v277, 0.0
  %v310 = vrot.slane %v309, 4
  %v311 = vadd.f32 %v309, %v310
  %v312 = vrot.slane %v311, 2
  %v313 = vadd.f32 %v311, %v312
  %v314 = vrot.slane %v313, 1
  %v315 = vadd.f32 %v313, %v314
  %v316 = vsel %vm205, %v278, 0.0
  %v317 = vrot.slane %v316, 4
  %v318 = vadd.f32 %v316, %v317
  %v319 = vrot.slane %v318, 2
  %v320 = vadd.f32 %v318, %v319
  %v321 = vrot.slane %v320, 1
  %v322 = vadd.f32 %v320, %v321
  %v323 = vsel %vm205, %v279, 0.0
  %v324 = vrot.slane %v323, 4
  %v325 = vadd.f32 %v323, %v324
  %v326 = vrot.slane %v325, 2
  %v327 = vadd.f32 %v325, %v326
  %v328 = vrot.slane %v327, 1
  %v329 = vadd.f32 %v327, %v328
  %v330 = vsel %vm205, %v280, 0.0
  %v331 = vrot.slane %v330, 4
  %v332 = vadd.f32 %v330, %v331
  %v333 = vrot.slane %v332, 2
  %v334 = vadd.f32 %v332, %v333
  %v335 = vrot.slane %v334, 1
  %v336 = vadd.f32 %v334, %v335
  %v345 = vsel %vm156, %v294, %v287
  %v346 = vsel %vm158, %v301, %v345
  %v347 = vsel %vm160, %v308, %v346
  %v348 = vsel %vm162, %v315, %v347
  %v349 = vsel %vm164, %v322, %v348
  %v350 = vsel %vm166, %v329, %v349
  %v351 = vsel %vm168, %v336, %v350
  %v353 = vadd.f32 %v216, %v351
  %354 = vst.msk [vmem:[#allocation3] sm:$0xff] %vm205, %v353
  %v355 = vld [vmem:[#allocation3] sm:$0xff]
  %356 = vst.msk [vmem:[%s6] sm:$0xff] %vm205, %v355
  // Predicated region
  $region26: #{bahdanau_attention.1} parent=0 // pred_check
    _
  $region27: #{bahdanau_attention.1} parent=0 // pred_check_branch
    %358 = sbr.rel (0) target = $region29
  $region28: #{bahdanau_attention.1} parent=0 // pred_region
    _
  $region29: #{bahdanau_attention.1} parent=0 // pred_fallthru
    _
  // Predicated region
  $region30: #{bahdanau_attention.1} parent=0 // pred_check
    _
  $region31: #{bahdanau_attention.1} parent=0 // pred_check_branch
    %360 = sbr.rel (0) target = $region33
  $region32: #{bahdanau_attention.1} parent=0 // pred_region
    _
  $region33: #{bahdanau_attention.1} parent=0 // pred_fallthru
    _
  // Predicated region
  $region34: #{bahdanau_attention.1} parent=0 // pred_check
    _
  $region35: #{bahdanau_attention.1} parent=0 // pred_check_branch
    %362 = sbr.rel (0) target = $region37
  $region36: #{bahdanau_attention.1} parent=0 // pred_region
    _
  $region37: #{bahdanau_attention.1} parent=0 // pred_fallthru
    _
  // Predicated region
  $region38: #{bahdanau_attention.1} parent=0 // pred_check
    _
  $region39: #{bahdanau_attention.1} parent=0 // pred_check_branch
    %364 = sbr.rel (0) target = $region41
  $region40: #{bahdanau_attention.1} parent=0 // pred_region
    _
  $region41: #{bahdanau_attention.1} parent=0 // pred_fallthru
    _

</llo_original>
